<compile_context>
chip_gen: v7x
topology: tpu7x:2x2x1
jax: 0.10.0
libtpu: 0.0.40
codegen_flags: <defaults>
</compile_context>

<pallas_src>
import functools

import jax
import jax.numpy as jnp
from jax.experimental import pallas as pl
from jax.experimental.pallas import tpu as pltpu


def _ffn_kernel(x_ref, w1_ref, b1_ref, w2_ref, b2_ref, gamma_ref, beta_ref,
                out_ref, *, eps, layer_norm, matmul_dtype):
    # x_ref:  (tm, D_in) f32          w1_ref: (D_in, D_mid)      matmul_dtype
    # b1_ref: (1, D_mid) f32          w2_ref: (D_mid, D_out_pad) matmul_dtype
    # b2_ref: (1, D_out_pad) f32      gamma/beta: (1, D_mid) f32
    # out_ref: (tm, D_out_pad) f32
    x = x_ref[...].astype(matmul_dtype)

    # fc1 (+ bias) -> tanh.  MXU matmul with f32 accumulation, tanh on the EUP.
    h = jnp.dot(x, w1_ref[...], preferred_element_type=jnp.float32)
    h = jnp.tanh(h + b1_ref[...])

    if layer_norm:
        # var = E[h^2] - mean^2: two independent XLU reductions instead of the
        # serial mean -> center -> square -> mean chain; fold gamma into
        # inv_std so only one full (tm, D_mid) scale pass remains.
        mean = jnp.mean(h, axis=-1, keepdims=True)
        mean_sq = jnp.mean(h * h, axis=-1, keepdims=True)
        var = jnp.maximum(mean_sq - mean * mean, 0.0)
        scale = jax.lax.rsqrt(var + eps) * gamma_ref[...]
        h = (h - mean) * scale + beta_ref[...]

    # fc2 (+ bias), again bf16 on the MXU with f32 accumulation.
    out = jnp.dot(h.astype(matmul_dtype), w2_ref[...],
                  preferred_element_type=jnp.float32)
    out_ref[...] = (out + b2_ref[...]).astype(out_ref.dtype)


def _tpu_vmem_limit():
    """Per-generation usable scoped-VMEM ceiling (bytes), queried defensively."""
    vmem_phys = 64 << 20                 # conservative default (v7x per-TC)
    try:
        info = pltpu.get_tpu_info()
        vmem_phys = int(getattr(info, "vmem_capacity_bytes", vmem_phys))
    except Exception:
        pass
    if vmem_phys >= (128 << 20):         # v5e / v6e: 128 MiB physical
        return 100 << 20
    return int(vmem_phys * 0.85)         # v7x: 64 MiB physical


def _tpu_tensorcores(num_tensorcores):
    """TensorCores per chip; caller flag wins, else a conservative hw query."""
    if num_tensorcores is not None:
        return max(1, int(num_tensorcores))
    try:
        info = pltpu.get_tpu_info()
        for name in ("num_tensorcores", "tensorcores_per_chip", "num_cores_per_chip"):
            v = getattr(info, name, None)
            if isinstance(v, int) and v > 0:
                return min(int(v), 2)
    except Exception:
        pass
    return 1


def _choose_block_rows(m, d_in, d_mid, d_out_pad, w_bytes, vmem_budget, cores):
    """Largest row tile (multiple of 8, <=1024) that fits the VMEM budget."""
    # Weight/param residency.  Budget for double-buffering so the fallback
    # (no pl.Buffered(1)) configuration still fits.
    resident = (2 * w_bytes * (d_in * d_mid + d_mid * d_out_pad)
                + 2 * 4 * (3 * d_mid + d_out_pad))
    # Per-row VMEM: double-buffered f32 x and out tiles, plus headroom for the
    # f32 intermediate h and its bf16 copy living in vregs / scratch.
    per_row = 2 * 4 * d_in + 2 * 4 * d_out_pad + 10 * d_mid
    avail = vmem_budget - resident - (4 << 20)     # slack for compiler scratch
    if avail < per_row * 8:
        # TODO(synk): for very large d_mid the resident weights overflow VMEM;
        # that needs an inner d_mid pipeline (pltpu.emit_pipeline), not done here.
        block = 8
    else:
        block = int(min(1024, avail // per_row))
    if cores > 1:
        # Keep >= `cores` grid steps so the batch axis can split across TCs.
        per_core = -(-m // cores)
        block = min(block, max(8, ((per_core + 7) // 8) * 8))
    if block >= m:
        return m                       # single full-extent block (any m)
    return max(8, (block // 8) * 8)


def ffn_layer(x, w1, b1, w2, b2, gamma, beta, *, eps=1e-5, layer_norm=True,
              matmul_dtype=jnp.bfloat16, num_tensorcores=None):
    """FFNLayer forward.

    x:     (..., D_in)
    w1:    (D_in, D_mid)   b1: (D_mid,)
    w2:    (D_mid, D_out)  b2: (D_out,)
    gamma, beta: (D_mid,)  LayerNorm affine params (ignored if layer_norm=False)
    returns (..., D_out) float32
    """
    # TODO(synk): nn.Dropout is the identity at inference; training-time
    # dropout masks (pltpu PRNG) are not implemented here.
    orig_shape = x.shape
    d_in = orig_shape[-1]
    d_mid = w1.shape[1]
    d_out = w2.shape[1]
    assert w1.shape == (d_in, d_mid)
    assert w2.shape == (d_mid, d_out)

    x2 = x.reshape(-1, d_in)
    if x2.dtype not in (jnp.float32, jnp.bfloat16):
        x2 = x2.astype(jnp.float32)
    m = x2.shape[0]

    # Lane-dense output: pad fc2 columns to a multiple of 128 (zero columns,
    # sliced off after the call) so output stores are unmasked vst's.
    d_out_pad = ((d_out + 127) // 128) * 128
    w1c = w1.astype(matmul_dtype)
    w2p = w2.astype(matmul_dtype)
    b2p = b2.astype(jnp.float32)
    if d_out_pad != d_out:
        w2p = jnp.pad(w2p, ((0, 0), (0, d_out_pad - d_out)))
        b2p = jnp.pad(b2p, ((0, d_out_pad - d_out),))

    w_bytes = jnp.dtype(matmul_dtype).itemsize
    vmem_limit = _tpu_vmem_limit()
    cores = _tpu_tensorcores(num_tensorcores)
    block_rows = _choose_block_rows(m, d_in, d_mid, d_out_pad, w_bytes,
                                    vmem_limit, cores)
    grid = (pl.cdiv(m, block_rows),)   # ragged tail handled by Pallas masking

    # Lane-dense (1, dim) parameter rows (broadcast along sublanes is free).
    b1r = b1.reshape(1, d_mid).astype(jnp.float32)
    b2r = b2p.reshape(1, d_out_pad)
    gr = gamma.reshape(1, d_mid).astype(jnp.float32)
    br = beta.reshape(1, d_mid).astype(jnp.float32)

    kernel = functools.partial(_ffn_kernel, eps=eps, layer_norm=layer_norm,
                               matmul_dtype=matmul_dtype)

    flops = 2 * m * (d_in * d_mid + d_mid * d_out_pad) + 10 * m * d_mid
    bytes_accessed = (x2.dtype.itemsize * m * d_in + 4 * m * d_out_pad
                      + w_bytes * (d_in * d_mid + d_mid * d_out_pad)
                      + 4 * (3 * d_mid + d_out_pad))
    cost = pl.CostEstimate(flops=int(flops), transcendentals=int(m * d_mid),
                           bytes_accessed=int(bytes_accessed))

    def call(single_buffer_consts):
        const_kw = ({"pipeline_mode": pl.Buffered(1)}
                    if single_buffer_consts else {})
        return pl.pallas_call(
            kernel,
            out_shape=jax.ShapeDtypeStruct((m, d_out_pad), jnp.float32),
            grid_spec=pltpu.PrefetchScalarGridSpec(
                num_scalar_prefetch=0,
                grid=grid,
                in_specs=[
                    pl.BlockSpec((block_rows, d_in), lambda i: (i, 0)),     # x rows
                    pl.BlockSpec((d_in, d_mid), lambda i: (0, 0), **const_kw),      # w1
                    pl.BlockSpec((1, d_mid), lambda i: (0, 0), **const_kw),         # b1
                    pl.BlockSpec((d_mid, d_out_pad), lambda i: (0, 0), **const_kw), # w2
                    pl.BlockSpec((1, d_out_pad), lambda i: (0, 0), **const_kw),     # b2
                    pl.BlockSpec((1, d_mid), lambda i: (0, 0), **const_kw),         # gamma
                    pl.BlockSpec((1, d_mid), lambda i: (0, 0), **const_kw),         # beta
                ],
                out_specs=pl.BlockSpec((block_rows, d_out_pad), lambda i: (i, 0)),
            ),
            compiler_params=pltpu.CompilerParams(
                dimension_semantics=("parallel",),
                vmem_limit_bytes=int(vmem_limit)),
            cost_estimate=cost,
        )(x2, w1c, b1r, w2p, b2r, gr, br)

    try:
        out = call(True)
    except Exception:
        # Fallback for JAX versions where BlockSpec.pipeline_mode / Buffered(1)
        # is not honored by the TPU pallas_call pipeline.
        out = call(False)

    out = out[:, :d_out]
    return out.reshape(orig_shape[:-1] + (d_out,))


def _reference(x, w1, b1, w2, b2, gamma, beta, *, eps=1e-5, layer_norm=True):
    """Pure-JAX reference matching the PyTorch forward (eval mode)."""
    h = jnp.tanh(jnp.matmul(x, w1) + b1)
    if layer_norm:
        mean = jnp.mean(h, axis=-1, keepdims=True)
        var = jnp.mean((h - mean) ** 2, axis=-1, keepdims=True)
        h = (h - mean) / jnp.sqrt(var + eps) * gamma + beta
    return jnp.matmul(h, w2) + b2


if __name__ == "__main__":
    batch, seq = 2, 8
    input_dim, intermediate_dim, output_dim = 32, 64, 16

    key = jax.random.PRNGKey(0)
    k_x, k_w1, k_b1, k_w2, k_b2 = jax.random.split(key, 5)

    # nn.Linear init: U(-1/sqrt(fan_in), 1/sqrt(fan_in)); weights stored (in, out).
    s1 = 1.0 / (input_dim ** 0.5)
    s2 = 1.0 / (intermediate_dim ** 0.5)
    w1 = jax.random.uniform(k_w1, (input_dim, intermediate_dim),
                            minval=-s1, maxval=s1, dtype=jnp.float32)
    b1 = jax.random.uniform(k_b1, (intermediate_dim,),
                            minval=-s1, maxval=s1, dtype=jnp.float32)
    w2 = jax.random.uniform(k_w2, (intermediate_dim, output_dim),
                            minval=-s2, maxval=s2, dtype=jnp.float32)
    b2 = jax.random.uniform(k_b2, (output_dim,),
                            minval=-s2, maxval=s2, dtype=jnp.float32)
    # nn.LayerNorm init: gamma = 1, beta = 0.
    gamma = jnp.ones((intermediate_dim,), jnp.float32)
    beta = jnp.zeros((intermediate_dim,), jnp.float32)

    x = jax.random.normal(k_x, (batch, seq, input_dim), dtype=jnp.float32)

    out = ffn_layer(x, w1, b1, w2, b2, gamma, beta)
    out = jax.block_until_ready(out)

    ref = _reference(x, w1, b1, w2, b2, gamma, beta)
    assert out.shape == (batch, seq, output_dim)
    # bf16 matmuls (f32 accumulation) -> looser tolerance than pure-f32.
    err = float(jnp.max(jnp.abs(out - ref)))
    assert jnp.allclose(out, ref, atol=2e-2, rtol=2e-2), err

    print("KERNEL_OK")
</pallas_src>

<mosaic_0001>
module attributes {stable_mosaic.version = 11 : i64} {
  func.func @_ffn_kernel(%arg0: i32, %arg1: memref<16x32xf32, #tpu.memory_space<vmem>>, %arg2: memref<32x64xbf16, #tpu.memory_space<vmem>>, %arg3: memref<1x64xf32, #tpu.memory_space<vmem>>, %arg4: memref<64x128xbf16, #tpu.memory_space<vmem>>, %arg5: memref<1x128xf32, #tpu.memory_space<vmem>>, %arg6: memref<1x64xf32, #tpu.memory_space<vmem>>, %arg7: memref<1x64xf32, #tpu.memory_space<vmem>>, %arg8: memref<16x128xf32, #tpu.memory_space<vmem>>) attributes {dimension_semantics = [#tpu.dimension_semantics<parallel>], iteration_bounds = array<i64: 1>, scalar_prefetch = 0 : i64, scratch_operands = 0 : i64, tpu.core_type = #tpu.core_type<tc>, window_params = [{transform_indices = @transform_0, window_bounds = array<i64: 16, 32>}, {pipeline_mode = #tpu.pipeline_mode<synchronous>, transform_indices = @transform_1, window_bounds = array<i64: 32, 64>}, {pipeline_mode = #tpu.pipeline_mode<synchronous>, transform_indices = @transform_2, window_bounds = array<i64: 1, 64>}, {pipeline_mode = #tpu.pipeline_mode<synchronous>, transform_indices = @transform_3, window_bounds = array<i64: 64, 128>}, {pipeline_mode = #tpu.pipeline_mode<synchronous>, transform_indices = @transform_4, window_bounds = array<i64: 1, 128>}, {pipeline_mode = #tpu.pipeline_mode<synchronous>, transform_indices = @transform_5, window_bounds = array<i64: 1, 64>}, {pipeline_mode = #tpu.pipeline_mode<synchronous>, transform_indices = @transform_6, window_bounds = array<i64: 1, 64>}, {transform_indices = @transform_7, window_bounds = array<i64: 16, 128>}]} {
    %c0 = arith.constant 0 : index
    %c0_0 = arith.constant 0 : index
    %0 = vector.load %arg1[%c0, %c0_0] : memref<16x32xf32, #tpu.memory_space<vmem>>, vector<16x32xf32>
    %1 = arith.truncf %0 : vector<16x32xf32> to vector<16x32xbf16>
    %c0_1 = arith.constant 0 : index
    %c0_2 = arith.constant 0 : index
    %2 = vector.load %arg2[%c0_1, %c0_2] : memref<32x64xbf16, #tpu.memory_space<vmem>>, vector<32x64xbf16>
    %cst = arith.constant dense<0.000000e+00> : vector<16x64xf32>
    %3 = tpu.matmul %1, %2, %cst {dimension_numbers = #tpu.dot_dimension_numbers<[1], [0], [0], [1], [0, 0, 1, 1], [], []>} : vector<16x32xbf16>, vector<32x64xbf16>, vector<16x64xf32> -> vector<16x64xf32>
    %c0_3 = arith.constant 0 : index
    %c0_4 = arith.constant 0 : index
    %4 = vector.load %arg3[%c0_3, %c0_4] : memref<1x64xf32, #tpu.memory_space<vmem>>, vector<1x64xf32>
    %5 = vector.broadcast %4 : vector<1x64xf32> to vector<16x64xf32>
    %6 = arith.addf %3, %5 : vector<16x64xf32>
    %7 = math.tanh %6 : vector<16x64xf32>
    %cst_5 = arith.constant dense<0.000000e+00> : vector<16xf32>
    %8 = vector.multi_reduction <add>, %7, %cst_5 [1] : vector<16x64xf32> to vector<16xf32>
    %9 = vector.shape_cast %8 : vector<16xf32> to vector<16x1xf32>
    %cst_6 = arith.constant 6.400000e+01 : f32
    %10 = vector.broadcast %cst_6 : f32 to vector<16x1xf32>
    %11 = arith.divf %9, %10 : vector<16x1xf32>
    %12 = arith.mulf %7, %7 : vector<16x64xf32>
    %cst_7 = arith.constant dense<0.000000e+00> : vector<16xf32>
    %13 = vector.multi_reduction <add>, %12, %cst_7 [1] : vector<16x64xf32> to vector<16xf32>
    %14 = vector.shape_cast %13 : vector<16xf32> to vector<16x1xf32>
    %cst_8 = arith.constant 6.400000e+01 : f32
    %15 = vector.broadcast %cst_8 : f32 to vector<16x1xf32>
    %16 = arith.divf %14, %15 : vector<16x1xf32>
    %17 = arith.mulf %11, %11 : vector<16x1xf32>
    %18 = arith.subf %16, %17 : vector<16x1xf32>
    %cst_9 = arith.constant 0.000000e+00 : f32
    %19 = vector.broadcast %cst_9 : f32 to vector<16x1xf32>
    %20 = arith.maximumf %18, %19 : vector<16x1xf32>
    %cst_10 = arith.constant 9.99999974E-6 : f32
    %21 = vector.broadcast %cst_10 : f32 to vector<16x1xf32>
    %22 = arith.addf %20, %21 : vector<16x1xf32>
    %23 = math.rsqrt %22 : vector<16x1xf32>
    %c0_11 = arith.constant 0 : index
    %c0_12 = arith.constant 0 : index
    %24 = vector.load %arg6[%c0_11, %c0_12] : memref<1x64xf32, #tpu.memory_space<vmem>>, vector<1x64xf32>
    %25 = vector.broadcast %23 : vector<16x1xf32> to vector<16x64xf32>
    %26 = vector.broadcast %24 : vector<1x64xf32> to vector<16x64xf32>
    %27 = arith.mulf %25, %26 : vector<16x64xf32>
    %28 = vector.broadcast %11 : vector<16x1xf32> to vector<16x64xf32>
    %29 = arith.subf %7, %28 : vector<16x64xf32>
    %30 = arith.mulf %29, %27 : vector<16x64xf32>
    %c0_13 = arith.constant 0 : index
    %c0_14 = arith.constant 0 : index
    %31 = vector.load %arg7[%c0_13, %c0_14] : memref<1x64xf32, #tpu.memory_space<vmem>>, vector<1x64xf32>
    %32 = vector.broadcast %31 : vector<1x64xf32> to vector<16x64xf32>
    %33 = arith.addf %30, %32 : vector<16x64xf32>
    %34 = arith.truncf %33 : vector<16x64xf32> to vector<16x64xbf16>
    %c0_15 = arith.constant 0 : index
    %c0_16 = arith.constant 0 : index
    %35 = vector.load %arg4[%c0_15, %c0_16] : memref<64x128xbf16, #tpu.memory_space<vmem>>, vector<64x128xbf16>
    %cst_17 = arith.constant dense<0.000000e+00> : vector<16x128xf32>
    %36 = tpu.matmul %34, %35, %cst_17 {dimension_numbers = #tpu.dot_dimension_numbers<[1], [0], [0], [1], [0, 0, 1, 1], [], []>} : vector<16x64xbf16>, vector<64x128xbf16>, vector<16x128xf32> -> vector<16x128xf32>
    %c0_18 = arith.constant 0 : index
    %c0_19 = arith.constant 0 : index
    %37 = vector.load %arg5[%c0_18, %c0_19] : memref<1x128xf32, #tpu.memory_space<vmem>>, vector<1x128xf32>
    %38 = vector.broadcast %37 : vector<1x128xf32> to vector<16x128xf32>
    %39 = arith.addf %36, %38 : vector<16x128xf32>
    %c0_20 = arith.constant 0 : index
    %c0_21 = arith.constant 0 : index
    %40 = vector.load %arg8[%c0_20, %c0_21] : memref<16x128xf32, #tpu.memory_space<vmem>>, vector<16x128xf32>
    tpu.vector_store %arg8[%c0_20, %c0_21], %39 {strides = array<i32>} : memref<16x128xf32, #tpu.memory_space<vmem>>, vector<16x128xf32>,
    return
  }
  func.func @transform_0(%arg0: i32) -> (i32, i32) {
    %c0_i32 = arith.constant 0 : i32
    %c0_i32_0 = arith.constant 0 : i32
    return %arg0, %c0_i32 : i32, i32
  }
  func.func @transform_1(%arg0: i32) -> (i32, i32) {
    %c0_i32 = arith.constant 0 : i32
    %c0_i32_0 = arith.constant 0 : i32
    %c0_i32_1 = arith.constant 0 : i32
    return %c0_i32, %c0_i32_0 : i32, i32
  }
  func.func @transform_2(%arg0: i32) -> (i32, i32) {
    %c0_i32 = arith.constant 0 : i32
    %c0_i32_0 = arith.constant 0 : i32
    %c0_i32_1 = arith.constant 0 : i32
    return %c0_i32, %c0_i32_0 : i32, i32
  }
  func.func @transform_3(%arg0: i32) -> (i32, i32) {
    %c0_i32 = arith.constant 0 : i32
    %c0_i32_0 = arith.constant 0 : i32
    %c0_i32_1 = arith.constant 0 : i32
    return %c0_i32, %c0_i32_0 : i32, i32
  }
  func.func @transform_4(%arg0: i32) -> (i32, i32) {
    %c0_i32 = arith.constant 0 : i32
    %c0_i32_0 = arith.constant 0 : i32
    %c0_i32_1 = arith.constant 0 : i32
    return %c0_i32, %c0_i32_0 : i32, i32
  }
  func.func @transform_5(%arg0: i32) -> (i32, i32) {
    %c0_i32 = arith.constant 0 : i32
    %c0_i32_0 = arith.constant 0 : i32
    %c0_i32_1 = arith.constant 0 : i32
    return %c0_i32, %c0_i32_0 : i32, i32
  }
  func.func @transform_6(%arg0: i32) -> (i32, i32) {
    %c0_i32 = arith.constant 0 : i32
    %c0_i32_0 = arith.constant 0 : i32
    %c0_i32_1 = arith.constant 0 : i32
    return %c0_i32, %c0_i32_0 : i32, i32
  }
  func.func @transform_7(%arg0: i32) -> (i32, i32) {
    %c0_i32 = arith.constant 0 : i32
    %c0_i32_0 = arith.constant 0 : i32
    return %arg0, %c0_i32 : i32, i32
  }
}

module attributes {stable_mosaic.version = 11 : i64} {
  func.func @_ffn_kernel(%arg0: i32, %arg1: memref<16x32xf32, #tpu.memory_space<vmem>>, %arg2: memref<32x64xbf16, #tpu.memory_space<vmem>>, %arg3: memref<1x64xf32, #tpu.memory_space<vmem>>, %arg4: memref<64x128xbf16, #tpu.memory_space<vmem>>, %arg5: memref<1x128xf32, #tpu.memory_space<vmem>>, %arg6: memref<1x64xf32, #tpu.memory_space<vmem>>, %arg7: memref<1x64xf32, #tpu.memory_space<vmem>>, %arg8: memref<16x128xf32, #tpu.memory_space<vmem>>) attributes {dimension_semantics = [#tpu.dimension_semantics<parallel>], iteration_bounds = array<i64: 1>, scalar_prefetch = 0 : i64, scratch_operands = 0 : i64, tpu.core_type = #tpu.core_type<tc>, window_params = [{transform_indices = @transform_0, window_bounds = array<i64: 16, 32>}, {pipeline_mode = #tpu.pipeline_mode<synchronous>, transform_indices = @transform_1, window_bounds = array<i64: 32, 64>}, {pipeline_mode = #tpu.pipeline_mode<synchronous>, transform_indices = @transform_2, window_bounds = array<i64: 1, 64>}, {pipeline_mode = #tpu.pipeline_mode<synchronous>, transform_indices = @transform_3, window_bounds = array<i64: 64, 128>}, {pipeline_mode = #tpu.pipeline_mode<synchronous>, transform_indices = @transform_4, window_bounds = array<i64: 1, 128>}, {pipeline_mode = #tpu.pipeline_mode<synchronous>, transform_indices = @transform_5, window_bounds = array<i64: 1, 64>}, {pipeline_mode = #tpu.pipeline_mode<synchronous>, transform_indices = @transform_6, window_bounds = array<i64: 1, 64>}, {transform_indices = @transform_7, window_bounds = array<i64: 16, 128>}]} {
    %c0 = arith.constant 0 : index
    %c0_0 = arith.constant 0 : index
    %0 = vector.load %arg1[%c0, %c0_0] : memref<16x32xf32, #tpu.memory_space<vmem>>, vector<16x32xf32>
    %1 = arith.truncf %0 : vector<16x32xf32> to vector<16x32xbf16>
    %c0_1 = arith.constant 0 : index
    %c0_2 = arith.constant 0 : index
    %2 = vector.load %arg2[%c0_1, %c0_2] : memref<32x64xbf16, #tpu.memory_space<vmem>>, vector<32x64xbf16>
    %cst = arith.constant dense<0.000000e+00> : vector<16x64xf32>
    %3 = tpu.matmul %1, %2, %cst {dimension_numbers = #tpu.dot_dimension_numbers<[1], [0], [0], [1], [0, 0, 1, 1], [], []>} : vector<16x32xbf16>, vector<32x64xbf16>, vector<16x64xf32> -> vector<16x64xf32>
    %c0_3 = arith.constant 0 : index
    %c0_4 = arith.constant 0 : index
    %4 = vector.load %arg3[%c0_3, %c0_4] : memref<1x64xf32, #tpu.memory_space<vmem>>, vector<1x64xf32>
    %5 = vector.broadcast %4 : vector<1x64xf32> to vector<16x64xf32>
    %6 = arith.addf %3, %5 : vector<16x64xf32>
    %7 = math.tanh %6 : vector<16x64xf32>
    %cst_5 = arith.constant dense<0.000000e+00> : vector<16xf32>
    %8 = vector.multi_reduction <add>, %7, %cst_5 [1] : vector<16x64xf32> to vector<16xf32>
    %9 = vector.shape_cast %8 : vector<16xf32> to vector<16x1xf32>
    %cst_6 = arith.constant 6.400000e+01 : f32
    %10 = vector.broadcast %cst_6 : f32 to vector<16x1xf32>
    %11 = arith.divf %9, %10 : vector<16x1xf32>
    %12 = arith.mulf %7, %7 : vector<16x64xf32>
    %cst_7 = arith.constant dense<0.000000e+00> : vector<16xf32>
    %13 = vector.multi_reduction <add>, %12, %cst_7 [1] : vector<16x64xf32> to vector<16xf32>
    %14 = vector.shape_cast %13 : vector<16xf32> to vector<16x1xf32>
    %cst_8 = arith.constant 6.400000e+01 : f32
    %15 = vector.broadcast %cst_8 : f32 to vector<16x1xf32>
    %16 = arith.divf %14, %15 : vector<16x1xf32>
    %17 = arith.mulf %11, %11 : vector<16x1xf32>
    %18 = arith.subf %16, %17 : vector<16x1xf32>
    %cst_9 = arith.constant 0.000000e+00 : f32
    %19 = vector.broadcast %cst_9 : f32 to vector<16x1xf32>
    %20 = arith.maximumf %18, %19 : vector<16x1xf32>
    %cst_10 = arith.constant 9.99999974E-6 : f32
    %21 = vector.broadcast %cst_10 : f32 to vector<16x1xf32>
    %22 = arith.addf %20, %21 : vector<16x1xf32>
    %23 = math.rsqrt %22 : vector<16x1xf32>
    %c0_11 = arith.constant 0 : index
    %c0_12 = arith.constant 0 : index
    %24 = vector.load %arg6[%c0_11, %c0_12] : memref<1x64xf32, #tpu.memory_space<vmem>>, vector<1x64xf32>
    %25 = vector.broadcast %23 : vector<16x1xf32> to vector<16x64xf32>
    %26 = vector.broadcast %24 : vector<1x64xf32> to vector<16x64xf32>
    %27 = arith.mulf %25, %26 : vector<16x64xf32>
    %28 = vector.broadcast %11 : vector<16x1xf32> to vector<16x64xf32>
    %29 = arith.subf %7, %28 : vector<16x64xf32>
    %30 = arith.mulf %29, %27 : vector<16x64xf32>
    %c0_13 = arith.constant 0 : index
    %c0_14 = arith.constant 0 : index
    %31 = vector.load %arg7[%c0_13, %c0_14] : memref<1x64xf32, #tpu.memory_space<vmem>>, vector<1x64xf32>
    %32 = vector.broadcast %31 : vector<1x64xf32> to vector<16x64xf32>
    %33 = arith.addf %30, %32 : vector<16x64xf32>
    %34 = arith.truncf %33 : vector<16x64xf32> to vector<16x64xbf16>
    %c0_15 = arith.constant 0 : index
    %c0_16 = arith.constant 0 : index
    %35 = vector.load %arg4[%c0_15, %c0_16] : memref<64x128xbf16, #tpu.memory_space<vmem>>, vector<64x128xbf16>
    %cst_17 = arith.constant dense<0.000000e+00> : vector<16x128xf32>
    %36 = tpu.matmul %34, %35, %cst_17 {dimension_numbers = #tpu.dot_dimension_numbers<[1], [0], [0], [1], [0, 0, 1, 1], [], []>} : vector<16x64xbf16>, vector<64x128xbf16>, vector<16x128xf32> -> vector<16x128xf32>
    %c0_18 = arith.constant 0 : index
    %c0_19 = arith.constant 0 : index
    %37 = vector.load %arg5[%c0_18, %c0_19] : memref<1x128xf32, #tpu.memory_space<vmem>>, vector<1x128xf32>
    %38 = vector.broadcast %37 : vector<1x128xf32> to vector<16x128xf32>
    %39 = arith.addf %36, %38 : vector<16x128xf32>
    %c0_20 = arith.constant 0 : index
    %c0_21 = arith.constant 0 : index
    %40 = vector.load %arg8[%c0_20, %c0_21] : memref<16x128xf32, #tpu.memory_space<vmem>>, vector<16x128xf32>
    tpu.vector_store %arg8[%c0_20, %c0_21], %39 {strides = array<i32>} : memref<16x128xf32, #tpu.memory_space<vmem>>, vector<16x128xf32>,
    return
  }
  func.func @transform_0(%arg0: i32) -> (i32, i32) {
    %c0_i32 = arith.constant 0 : i32
    %c0_i32_0 = arith.constant 0 : i32
    return %arg0, %c0_i32 : i32, i32
  }
  func.func @transform_1(%arg0: i32) -> (i32, i32) {
    %c0_i32 = arith.constant 0 : i32
    %c0_i32_0 = arith.constant 0 : i32
    %c0_i32_1 = arith.constant 0 : i32
    return %c0_i32, %c0_i32_0 : i32, i32
  }
  func.func @transform_2(%arg0: i32) -> (i32, i32) {
    %c0_i32 = arith.constant 0 : i32
    %c0_i32_0 = arith.constant 0 : i32
    %c0_i32_1 = arith.constant 0 : i32
    return %c0_i32, %c0_i32_0 : i32, i32
  }
  func.func @transform_3(%arg0: i32) -> (i32, i32) {
    %c0_i32 = arith.constant 0 : i32
    %c0_i32_0 = arith.constant 0 : i32
    %c0_i32_1 = arith.constant 0 : i32
    return %c0_i32, %c0_i32_0 : i32, i32
  }
  func.func @transform_4(%arg0: i32) -> (i32, i32) {
    %c0_i32 = arith.constant 0 : i32
    %c0_i32_0 = arith.constant 0 : i32
    %c0_i32_1 = arith.constant 0 : i32
    return %c0_i32, %c0_i32_0 : i32, i32
  }
  func.func @transform_5(%arg0: i32) -> (i32, i32) {
    %c0_i32 = arith.constant 0 : i32
    %c0_i32_0 = arith.constant 0 : i32
    %c0_i32_1 = arith.constant 0 : i32
    return %c0_i32, %c0_i32_0 : i32, i32
  }
  func.func @transform_6(%arg0: i32) -> (i32, i32) {
    %c0_i32 = arith.constant 0 : i32
    %c0_i32_0 = arith.constant 0 : i32
    %c0_i32_1 = arith.constant 0 : i32
    return %c0_i32, %c0_i32_0 : i32, i32
  }
  func.func @transform_7(%arg0: i32) -> (i32, i32) {
    %c0_i32 = arith.constant 0 : i32
    %c0_i32_0 = arith.constant 0 : i32
    return %arg0, %c0_i32 : i32, i32
  }
}

</mosaic_0001>

<llo_original>
// kernel: tpu_custom_call.1
$region0: #{tpu_custom_call.1}
  #allocation0 [shape = 'u32[]', space=smem, size = 0x4, offset = 0x4, fixed_abs, tag = 'smem constant byte address 0x4 - core index']
  #allocation1 [shape = 'u32[144,128]{1,0:T(1,128)}', space=vmem, size = 0x12000, scoped, tag = 'internal scratch']
  %s0 = inlined_call_operand.hbm [shape: f32[16,32], index: 0, kind: input, shape index: {}]
  %s1 = inlined_call_operand.hbm [shape: bf16[32,64], index: 1, kind: input, shape index: {}]
  %s2 = inlined_call_operand.vmem [shape: f32[1,64], index: 2, kind: input, shape index: {}]
  %s3 = inlined_call_operand.hbm [shape: bf16[64,128], index: 3, kind: input, shape index: {}]
  %s4 = inlined_call_operand.vmem [shape: f32[1,128], index: 4, kind: input, shape index: {}]
  %s5 = inlined_call_operand.vmem [shape: f32[1,64], index: 5, kind: input, shape index: {}]
  %s6 = inlined_call_operand.vmem [shape: f32[1,64], index: 6, kind: input, shape index: {}]
  %s7 = inlined_call_operand.hbm [shape: f32[16,128], index: 7, kind: output, shape index: {}]
  %s8 = sld [smem:[#allocation0]]
  $region50: #{tpu_custom_call.1} parent=0
    _
  %s10 = ssub.s32 1, %s8
  %s11 = scalar_select 0, %s10, %s8
  $region1: #{tpu_custom_call.1} parent=0
    #allocation2 [shape = 'u8[8192]{0}', space=vmem, size = 0x2000, scoped, tag = 'input window, operand 0, single buffered']
    #allocation3 [shape = 's32[1]{0}', space=sflag, size = 0x4, scoped, tag = 'scoped memory for tpu_custom_call.1']
    #allocation4 [shape = 's32[1]{0}', space=sflag, size = 0x4, scoped, tag = 'scoped memory for tpu_custom_call.1']
    #allocation5 [shape = 'u8[8192]{0}', space=vmem, size = 0x2000, scoped, tag = 'input window, operand 1, single buffered']
    #allocation6 [shape = 's32[1]{0}', space=sflag, size = 0x4, scoped, tag = 'scoped memory for tpu_custom_call.1']
    #allocation7 [shape = 'u8[16384]{0}', space=vmem, size = 0x4000, scoped, tag = 'input window, operand 3, single buffered']
    #allocation8 [shape = 'u8[8192]{0}', space=vmem, size = 0x2000, scoped, tag = 'output window, operand 0, single buffered']
    %12 = vsyncpa [#allocation3], 0
    %13 = vsyncpa [#allocation6], 0
    %14 = vsyncpa [#allocation4], 0
    // Predicated region
    $region2: #{tpu_custom_call.1} parent=1 // pred_check
      _
    $region3: #{tpu_custom_call.1} parent=1 // pred_check_branch
      %16 = sbr.rel (0) target = $region5
    $region4: #{tpu_custom_call.1} parent=1 // pred_region
      %s18 = ssub.s32 256, 256
      %19 = vsyncadd [#allocation3], %s18
      %s20 = sshll.u32 [#allocation2], 4
      %s21 = int_to_ptr.vmem [resolvable:$true] %s20
      %26 = dma.hbm_to_vmem [thread:$0]  %s0, 256, %s21, [#allocation3], 128, 128, 8
    $region5: #{tpu_custom_call.1} parent=1 // pred_fallthru
      _
    // Predicated region
    $region6: #{tpu_custom_call.1} parent=1 // pred_check
      _
    $region7: #{tpu_custom_call.1} parent=1 // pred_check_branch
      %28 = sbr.rel (0) target = $region9
    $region8: #{tpu_custom_call.1} parent=1 // pred_region
      %s30 = ssub.s32 256, 256
      %31 = vsyncadd [#allocation6], %s30
      %s32 = sshll.u32 [#allocation5], 4
      %s33 = int_to_ptr.vmem [resolvable:$true] %s32
      %38 = dma.hbm_to_vmem [thread:$0]  %s1, 256, %s33, [#allocation6], 64, 64, 4
    $region9: #{tpu_custom_call.1} parent=1 // pred_fallthru
      _
    // Predicated region
    $region10: #{tpu_custom_call.1} parent=1 // pred_check
      _
    $region11: #{tpu_custom_call.1} parent=1 // pred_check_branch
      %40 = sbr.rel (0) target = $region13
    $region12: #{tpu_custom_call.1} parent=1 // pred_region
      _
    $region13: #{tpu_custom_call.1} parent=1 // pred_fallthru
      _
    // Predicated region
    $region14: #{tpu_custom_call.1} parent=1 // pred_check
      _
    $region15: #{tpu_custom_call.1} parent=1 // pred_check_branch
      %42 = sbr.rel (0) target = $region17
    $region16: #{tpu_custom_call.1} parent=1 // pred_region
      %s44 = ssub.s32 512, 512
      %45 = vsyncadd [#allocation6], %s44
      %s46 = sshll.u32 [#allocation7], 4
      %s47 = int_to_ptr.vmem [resolvable:$true] %s46
      %52 = dma.hbm_to_vmem [thread:$0]  %s3, 512, %s47, [#allocation6], 64, 64, 4
    $region17: #{tpu_custom_call.1} parent=1 // pred_fallthru
      _
    // Predicated region
    $region18: #{tpu_custom_call.1} parent=1 // pred_check
      _
    $region19: #{tpu_custom_call.1} parent=1 // pred_check_branch
      %54 = sbr.rel (0) target = $region21
    $region20: #{tpu_custom_call.1} parent=1 // pred_region
      _
    $region21: #{tpu_custom_call.1} parent=1 // pred_fallthru
      _
    // Predicated region
    $region22: #{tpu_custom_call.1} parent=1 // pred_check
      _
    $region23: #{tpu_custom_call.1} parent=1 // pred_check_branch
      %56 = sbr.rel (0) target = $region25
    $region24: #{tpu_custom_call.1} parent=1 // pred_region
      _
    $region25: #{tpu_custom_call.1} parent=1 // pred_fallthru
      _
    // Predicated region
    $region26: #{tpu_custom_call.1} parent=1 // pred_check
      _
    $region27: #{tpu_custom_call.1} parent=1 // pred_check_branch
      %58 = sbr.rel (0) target = $region29
    $region28: #{tpu_custom_call.1} parent=1 // pred_region
      _
    $region29: #{tpu_custom_call.1} parent=1 // pred_fallthru
      _
    // Predicated region
    $region30: #{tpu_custom_call.1} parent=1 // pred_check
      _
    $region31: #{tpu_custom_call.1} parent=1 // pred_check_branch
      %60 = sbr.rel (0) target = $region33
    $region32: #{tpu_custom_call.1} parent=1 // pred_region
      %61 = dma.done [#allocation3], 256
    $region33: #{tpu_custom_call.1} parent=1 // pred_fallthru
      _
    // Predicated region
    $region34: #{tpu_custom_call.1} parent=1 // pred_check
      _
    $region35: #{tpu_custom_call.1} parent=1 // pred_check_branch
      %63 = sbr.rel (0) target = $region37
    $region36: #{tpu_custom_call.1} parent=1 // pred_region
      %64 = dma.done [#allocation6], 256
    $region37: #{tpu_custom_call.1} parent=1 // pred_fallthru
      _
    // Predicated region
    $region38: #{tpu_custom_call.1} parent=1 // pred_check
      _
    $region39: #{tpu_custom_call.1} parent=1 // pred_check_branch
      %66 = sbr.rel (0) target = $region41
    $region40: #{tpu_custom_call.1} parent=1 // pred_region
      %67 = dma.done [#allocation6], 512
    $region41: #{tpu_custom_call.1} parent=1 // pred_fallthru
      _
    %v69 = vld [vmem:[#allocation2] sm:$0xff]
    %v70 = vld [vmem:[#allocation2 + $0x8] sm:$0xff]
    %v71 = vpack.c.bf16 %v70, %v69
    %v72 = vld [vmem:[#allocation5] sm:$0xf]
    %v73 = vld [vmem:[#allocation5 + $0x4] sm:$0xf]
    %v74 = vld [vmem:[#allocation5 + $0x8] sm:$0xf]
    %v75 = vld [vmem:[#allocation5 + $0xc] sm:$0xf]
    %v76 = vld [vmem:[%s2] sm:$0x1]
    %v78 = vlaneseq
    %v79 = vshrl.u32 %v78, 7
    %v80 = vsub.s32 0, %v79
    %v81 = vrot.slane %v76, %v80
    %v87 = vunpack.c.l.b16 %v72
    %v88 = vunpack.c.l.b16 %v73
    %v89 = vunpack.c.l.b16 %v74
    %v90 = vunpack.c.l.b16 %v75
    %v91 = vpack.c.b16 %v88, %v87
    %v92 = vpack.c.b16 %v90, %v89
    %vm95 = vcmask 261120
    %v97 = vsel %vm95, %v71, 0
    %99 = vmatprep.subr.bf16.mxu0 0
    %100 = vmatpush1.bf16.msra.mxu0 %v91
    %101 = vmatprep.subr.bf16.mxu0 0
    %102 = vmatpush1.bf16.msra.mxu0 %v92
    %103 = vmatprep.subr.bf16.mxu0 0
    %104 = vmatpush1.bf16.msra.mxu0 0
    %105 = vmatprep.subr.bf16.mxu0 0
    %106 = vmatpush1.bf16.msra.mxu0 0
    %107 = vmatprep.subr.bf16.mxu0 0
    %108 = vmatpush1.bf16.msra.mxu0 0
    %109 = vmatprep.subr.bf16.mxu0 0
    %110 = vmatpush1.bf16.msra.mxu0 0
    %111 = vmatprep.subr.bf16.mxu0 0
    %112 = vmatpush1.bf16.msra.mxu0 0
    %113 = vmatprep.subr.bf16.mxu0 0
    %114 = vmatpush1.bf16.msra.mxu0 0
    %115 = vmatprep.subr.bf16.mxu0 0
    %116 = vmatpush1.bf16.msra.mxu0 0
    %117 = vmatprep.subr.bf16.mxu0 0
    %118 = vmatpush1.bf16.msra.mxu0 0
    %119 = vmatprep.subr.bf16.mxu0 0
    %120 = vmatpush1.bf16.msra.mxu0 0
    %121 = vmatprep.subr.bf16.mxu0 0
    %122 = vmatpush1.bf16.msra.mxu0 0
    %123 = vmatprep.subr.bf16.mxu0 0
    %124 = vmatpush1.bf16.msra.mxu0 0
    %125 = vmatprep.subr.bf16.mxu0 0
    %126 = vmatpush1.bf16.msra.mxu0 0
    %127 = vmatprep.subr.bf16.mxu0 0
    %128 = vmatpush1.bf16.msra.mxu0 0
    %129 = vmatprep.subr.bf16.mxu0 0
    %130 = vmatpush1.bf16.msra.mxu0 0
    %131 = vmatprep.mubr.bf16.mxu0 0
    %132 = vmatmul.mubr.bf16.gmra.mrb[0].mxu0 %v97
    %v133 = vpop.f32.mrb[0].mxu0
    %v134 = vadd.f32 %v81, %v133
    %v135 = vpop.f32.mrb[0].mxu0
    %v136 = vpop.f32.mrb[0].mxu0
    %v137 = vadd.f32 %v81, %v136
    %v138 = vpop.f32.mrb[0].mxu0
    %139 = vdwg.mxu0
    %v140 = vtanh.pop %v134
    %v141 = vtanh.pop %v137
    %vm142 = vcmask 523264
    %v143 = vsel %vm142, %v140, 0.0
    %144 = vadd.xlane.f32.xlu0 %v143
    %v145 = vpop.xlane.xlu0 %144
    %v146 = vsel %vm142, %v141, 0.0
    %147 = vadd.xlane.f32.xlu0 %v146
    %v148 = vpop.xlane.xlu0 %147
    %v149 = vrcp.pop 64.0
    %v150 = vmul.f32 %v145, %v149
    %v151 = vmul.f32 %v148, %v149
    %v152 = vmul.f32 %v140, %v140
    %v153 = vmul.f32 %v141, %v141
    %v154 = vsel %vm142, %v152, 0.0
    %155 = vadd.xlane.f32.xlu0 %v154
    %v156 = vpop.xlane.xlu0 %155
    %v157 = vsel %vm142, %v153, 0.0
    %158 = vadd.xlane.f32.xlu0 %v157
    %v159 = vpop.xlane.xlu0 %158
    %v160 = vmul.f32 %v156, %v149
    %v161 = vmul.f32 %v159, %v149
    %v162 = vmul.f32 %v150, %v150
    %v163 = vmul.f32 %v151, %v151
    %v164 = vsub.f32 %v160, %v162
    %v165 = vsub.f32 %v161, %v163
    %v166 = vmax.f32 %v164, 0.0
    %v167 = vmax.f32 %v165, 0.0
    %v168 = vadd.f32 %v166, 1e-05
    %v169 = vadd.f32 %v167, 1e-05
    %v170 = vrsqrt.pop %v168
    %v171 = vrsqrt.pop %v169
    %v172 = vld [vmem:[%s5] sm:$0x1]
    %v174 = vlaneseq
    %v175 = vshrl.u32 %v174, 7
    %v176 = vsub.s32 0, %v175
    %v177 = vrot.slane %v172, %v176
    %v179 = vmul.f32 %v170, %v177
    %v180 = vmul.f32 %v171, %v177
    %v181 = vsub.f32 %v140, %v150
    %v182 = vsub.f32 %v141, %v151
    %v183 = vmul.f32 %v181, %v179
    %v184 = vmul.f32 %v182, %v180
    %v185 = vld [vmem:[%s6] sm:$0x1]
    %v187 = vlaneseq
    %v188 = vshrl.u32 %v187, 7
    %v189 = vsub.s32 0, %v188
    %v190 = vrot.slane %v185, %v189
    %v192 = vadd.f32 %v183, %v190
    %v193 = vadd.f32 %v184, %v190
    %v194 = vpack.c.bf16 %v193, %v192
    %v195 = vld [vmem:[#allocation7] sm:$0xf]
    %v196 = vld [vmem:[#allocation7 + $0x4] sm:$0xf]
    %v197 = vld [vmem:[#allocation7 + $0x8] sm:$0xf]
    %v198 = vld [vmem:[#allocation7 + $0xc] sm:$0xf]
    %v199 = vld [vmem:[#allocation7 + $0x10] sm:$0xf]
    %v200 = vld [vmem:[#allocation7 + $0x14] sm:$0xf]
    %v201 = vld [vmem:[#allocation7 + $0x18] sm:$0xf]
    %v202 = vld [vmem:[#allocation7 + $0x1c] sm:$0xf]
    %v203 = vld [vmem:[%s4] sm:$0x1]
    %v205 = vlaneseq
    %v206 = vshrl.u32 %v205, 7
    %v207 = vsub.s32 0, %v206
    %v208 = vrot.slane %v203, %v207
    %v218 = vunpack.c.l.b16 %v195
    %v219 = vunpack.c.l.b16 %v196
    %v220 = vunpack.c.l.b16 %v197
    %v221 = vunpack.c.l.b16 %v198
    %v222 = vunpack.c.l.b16 %v199
    %v223 = vunpack.c.l.b16 %v200
    %v224 = vunpack.c.l.b16 %v201
    %v225 = vunpack.c.l.b16 %v202
    %v226 = vpack.c.b16 %v219, %v218
    %v227 = vpack.c.b16 %v221, %v220
    %v228 = vpack.c.b16 %v223, %v222
    %v229 = vpack.c.b16 %v225, %v224
    %v235 = vsel %vm142, %v194, 0
    %237 = vmatprep.subr.bf16.mxu0 0
    %238 = vmatpush1.bf16.msra.mxu0 %v226
    %239 = vmatprep.subr.bf16.mxu0 0
    %240 = vmatpush1.bf16.msra.mxu0 %v227
    %241 = vmatprep.subr.bf16.mxu0 0
    %242 = vmatpush1.bf16.msra.mxu0 %v228
    %243 = vmatprep.subr.bf16.mxu0 0
    %244 = vmatpush1.bf16.msra.mxu0 %v229
    %245 = vmatprep.subr.bf16.mxu0 0
    %246 = vmatpush1.bf16.msra.mxu0 0
    %247 = vmatprep.subr.bf16.mxu0 0
    %248 = vmatpush1.bf16.msra.mxu0 0
    %249 = vmatprep.subr.bf16.mxu0 0
    %250 = vmatpush1.bf16.msra.mxu0 0
    %251 = vmatprep.subr.bf16.mxu0 0
    %252 = vmatpush1.bf16.msra.mxu0 0
    %253 = vmatprep.subr.bf16.mxu0 0
    %254 = vmatpush1.bf16.msra.mxu0 0
    %255 = vmatprep.subr.bf16.mxu0 0
    %256 = vmatpush1.bf16.msra.mxu0 0
    %257 = vmatprep.subr.bf16.mxu0 0
    %258 = vmatpush1.bf16.msra.mxu0 0
    %259 = vmatprep.subr.bf16.mxu0 0
    %260 = vmatpush1.bf16.msra.mxu0 0
    %261 = vmatprep.subr.bf16.mxu0 0
    %262 = vmatpush1.bf16.msra.mxu0 0
    %263 = vmatprep.subr.bf16.mxu0 0
    %264 = vmatpush1.bf16.msra.mxu0 0
    %265 = vmatprep.subr.bf16.mxu0 0
    %266 = vmatpush1.bf16.msra.mxu0 0
    %267 = vmatprep.subr.bf16.mxu0 0
    %268 = vmatpush1.bf16.msra.mxu0 0
    %269 = vmatprep.mubr.bf16.mxu0 0
    %270 = vmatmul.mubr.bf16.gmra.mrb[0].mxu0 %v235
    %v271 = vpop.f32.mrb[0].mxu0
    %v272 = vadd.f32 %v208, %v271
    %v273 = vpop.f32.mrb[0].mxu0
    %v274 = vpop.f32.mrb[0].mxu0
    %v275 = vadd.f32 %v208, %v274
    %v276 = vpop.f32.mrb[0].mxu0
    %277 = vdwg.mxu0
    %278 = vst [vmem:[#allocation8] sm:$0xff] %v272
    %279 = vst [vmem:[#allocation8 + $0x8] sm:$0xff] %v275
    // Predicated region
    $region42: #{tpu_custom_call.1} parent=1 // pred_check
      _
    $region43: #{tpu_custom_call.1} parent=1 // pred_check_branch
      %281 = sbr.rel (0) target = $region45
    $region44: #{tpu_custom_call.1} parent=1 // pred_region
      %s283 = ssub.s32 256, 256
      %284 = vsyncadd [#allocation4], %s283
      %s285 = sshll.u32 [#allocation8], 4
      %s286 = int_to_ptr.vmem [resolvable:$true] %s285
      %291 = dma.vmem_to_hbm [thread:$0]  %s286, 256, %s7, [#allocation4], 128, 128, 8
    $region45: #{tpu_custom_call.1} parent=1 // pred_fallthru
      _
    // Predicated region
    $region46: #{tpu_custom_call.1} parent=1 // pred_check
      _
    $region47: #{tpu_custom_call.1} parent=1 // pred_check_branch
      %293 = sbr.rel (0) target = $region49
    $region48: #{tpu_custom_call.1} parent=1 // pred_region
      %294 = dma.done [#allocation4], 256
    $region49: #{tpu_custom_call.1} parent=1 // pred_fallthru
      _
    %295 = vsyncpa [#allocation3], 1
    %296 = vsyncpa [#allocation6], 1
    %297 = vsyncpa [#allocation4], 1

// kernel: tpu_custom_call.1
$region0: #{tpu_custom_call.1}
  #allocation0 [shape = 'u32[]', space=smem, size = 0x4, offset = 0x4, fixed_abs, tag = 'smem constant byte address 0x4 - core index']
  #allocation1 [shape = 'u32[144,128]{1,0:T(1,128)}', space=vmem, size = 0x12000, scoped, tag = 'internal scratch']
  %s0 = inlined_call_operand.hbm [shape: f32[16,32], index: 0, kind: input, shape index: {}]
  %s1 = inlined_call_operand.hbm [shape: bf16[32,64], index: 1, kind: input, shape index: {}]
  %s2 = inlined_call_operand.vmem [shape: f32[1,64], index: 2, kind: input, shape index: {}]
  %s3 = inlined_call_operand.hbm [shape: bf16[64,128], index: 3, kind: input, shape index: {}]
  %s4 = inlined_call_operand.vmem [shape: f32[1,128], index: 4, kind: input, shape index: {}]
  %s5 = inlined_call_operand.vmem [shape: f32[1,64], index: 5, kind: input, shape index: {}]
  %s6 = inlined_call_operand.vmem [shape: f32[1,64], index: 6, kind: input, shape index: {}]
  %s7 = inlined_call_operand.hbm [shape: f32[16,128], index: 7, kind: output, shape index: {}]
  %s8 = sld [smem:[#allocation0]]
  $region50: #{tpu_custom_call.1} parent=0
    _
  %s10 = ssub.s32 1, %s8
  %s11 = scalar_select 0, %s10, %s8
  $region1: #{tpu_custom_call.1} parent=0
    #allocation2 [shape = 'u8[8192]{0}', space=vmem, size = 0x2000, scoped, tag = 'input window, operand 0, single buffered']
    #allocation3 [shape = 's32[1]{0}', space=sflag, size = 0x4, scoped, tag = 'scoped memory for tpu_custom_call.1']
    #allocation4 [shape = 's32[1]{0}', space=sflag, size = 0x4, scoped, tag = 'scoped memory for tpu_custom_call.1']
    #allocation5 [shape = 'u8[8192]{0}', space=vmem, size = 0x2000, scoped, tag = 'input window, operand 1, single buffered']
    #allocation6 [shape = 's32[1]{0}', space=sflag, size = 0x4, scoped, tag = 'scoped memory for tpu_custom_call.1']
    #allocation7 [shape = 'u8[16384]{0}', space=vmem, size = 0x4000, scoped, tag = 'input window, operand 3, single buffered']
    #allocation8 [shape = 'u8[8192]{0}', space=vmem, size = 0x2000, scoped, tag = 'output window, operand 0, single buffered']
    %12 = vsyncpa [#allocation3], 0
    %13 = vsyncpa [#allocation6], 0
    %14 = vsyncpa [#allocation4], 0
    // Predicated region
    $region2: #{tpu_custom_call.1} parent=1 // pred_check
      _
    $region3: #{tpu_custom_call.1} parent=1 // pred_check_branch
      %16 = sbr.rel (0) target = $region5
    $region4: #{tpu_custom_call.1} parent=1 // pred_region
      %s18 = ssub.s32 256, 256
      %19 = vsyncadd [#allocation3], %s18
      %s20 = sshll.u32 [#allocation2], 4
      %s21 = int_to_ptr.vmem [resolvable:$true] %s20
      %26 = dma.hbm_to_vmem [thread:$0]  %s0, 256, %s21, [#allocation3], 128, 128, 8
    $region5: #{tpu_custom_call.1} parent=1 // pred_fallthru
      _
    // Predicated region
    $region6: #{tpu_custom_call.1} parent=1 // pred_check
      _
    $region7: #{tpu_custom_call.1} parent=1 // pred_check_branch
      %28 = sbr.rel (0) target = $region9
    $region8: #{tpu_custom_call.1} parent=1 // pred_region
      %s30 = ssub.s32 256, 256
      %31 = vsyncadd [#allocation6], %s30
      %s32 = sshll.u32 [#allocation5], 4
      %s33 = int_to_ptr.vmem [resolvable:$true] %s32
      %38 = dma.hbm_to_vmem [thread:$0]  %s1, 256, %s33, [#allocation6], 64, 64, 4
    $region9: #{tpu_custom_call.1} parent=1 // pred_fallthru
      _
    // Predicated region
    $region10: #{tpu_custom_call.1} parent=1 // pred_check
      _
    $region11: #{tpu_custom_call.1} parent=1 // pred_check_branch
      %40 = sbr.rel (0) target = $region13
    $region12: #{tpu_custom_call.1} parent=1 // pred_region
      _
    $region13: #{tpu_custom_call.1} parent=1 // pred_fallthru
      _
    // Predicated region
    $region14: #{tpu_custom_call.1} parent=1 // pred_check
      _
    $region15: #{tpu_custom_call.1} parent=1 // pred_check_branch
      %42 = sbr.rel (0) target = $region17
    $region16: #{tpu_custom_call.1} parent=1 // pred_region
      %s44 = ssub.s32 512, 512
      %45 = vsyncadd [#allocation6], %s44
      %s46 = sshll.u32 [#allocation7], 4
      %s47 = int_to_ptr.vmem [resolvable:$true] %s46
      %52 = dma.hbm_to_vmem [thread:$0]  %s3, 512, %s47, [#allocation6], 64, 64, 4
    $region17: #{tpu_custom_call.1} parent=1 // pred_fallthru
      _
    // Predicated region
    $region18: #{tpu_custom_call.1} parent=1 // pred_check
      _
    $region19: #{tpu_custom_call.1} parent=1 // pred_check_branch
      %54 = sbr.rel (0) target = $region21
    $region20: #{tpu_custom_call.1} parent=1 // pred_region
      _
    $region21: #{tpu_custom_call.1} parent=1 // pred_fallthru
      _
    // Predicated region
    $region22: #{tpu_custom_call.1} parent=1 // pred_check
      _
    $region23: #{tpu_custom_call.1} parent=1 // pred_check_branch
      %56 = sbr.rel (0) target = $region25
    $region24: #{tpu_custom_call.1} parent=1 // pred_region
      _
    $region25: #{tpu_custom_call.1} parent=1 // pred_fallthru
      _
    // Predicated region
    $region26: #{tpu_custom_call.1} parent=1 // pred_check
      _
    $region27: #{tpu_custom_call.1} parent=1 // pred_check_branch
      %58 = sbr.rel (0) target = $region29
    $region28: #{tpu_custom_call.1} parent=1 // pred_region
      _
    $region29: #{tpu_custom_call.1} parent=1 // pred_fallthru
      _
    // Predicated region
    $region30: #{tpu_custom_call.1} parent=1 // pred_check
      _
    $region31: #{tpu_custom_call.1} parent=1 // pred_check_branch
      %60 = sbr.rel (0) target = $region33
    $region32: #{tpu_custom_call.1} parent=1 // pred_region
      %61 = dma.done [#allocation3], 256
    $region33: #{tpu_custom_call.1} parent=1 // pred_fallthru
      _
    // Predicated region
    $region34: #{tpu_custom_call.1} parent=1 // pred_check
      _
    $region35: #{tpu_custom_call.1} parent=1 // pred_check_branch
      %63 = sbr.rel (0) target = $region37
    $region36: #{tpu_custom_call.1} parent=1 // pred_region
      %64 = dma.done [#allocation6], 256
    $region37: #{tpu_custom_call.1} parent=1 // pred_fallthru
      _
    // Predicated region
    $region38: #{tpu_custom_call.1} parent=1 // pred_check
      _
    $region39: #{tpu_custom_call.1} parent=1 // pred_check_branch
      %66 = sbr.rel (0) target = $region41
    $region40: #{tpu_custom_call.1} parent=1 // pred_region
      %67 = dma.done [#allocation6], 512
    $region41: #{tpu_custom_call.1} parent=1 // pred_fallthru
      _
    %v69 = vld [vmem:[#allocation2] sm:$0xff]
    %v70 = vld [vmem:[#allocation2 + $0x8] sm:$0xff]
    %v71 = vpack.c.bf16 %v70, %v69
    %v72 = vld [vmem:[#allocation5] sm:$0xf]
    %v73 = vld [vmem:[#allocation5 + $0x4] sm:$0xf]
    %v74 = vld [vmem:[#allocation5 + $0x8] sm:$0xf]
    %v75 = vld [vmem:[#allocation5 + $0xc] sm:$0xf]
    %v76 = vld [vmem:[%s2] sm:$0x1]
    %v78 = vlaneseq
    %v79 = vshrl.u32 %v78, 7
    %v80 = vsub.s32 0, %v79
    %v81 = vrot.slane %v76, %v80
    %v87 = vunpack.c.l.b16 %v72
    %v88 = vunpack.c.l.b16 %v73
    %v89 = vunpack.c.l.b16 %v74
    %v90 = vunpack.c.l.b16 %v75
    %v91 = vpack.c.b16 %v88, %v87
    %v92 = vpack.c.b16 %v90, %v89
    %vm95 = vcmask 261120
    %v97 = vsel %vm95, %v71, 0
    %99 = vmatprep.subr.bf16.mxu0 0
    %100 = vmatpush1.bf16.msra.mxu0 %v91
    %101 = vmatprep.subr.bf16.mxu0 0
    %102 = vmatpush1.bf16.msra.mxu0 %v92
    %103 = vmatprep.subr.bf16.mxu0 0
    %104 = vmatpush1.bf16.msra.mxu0 0
    %105 = vmatprep.subr.bf16.mxu0 0
    %106 = vmatpush1.bf16.msra.mxu0 0
    %107 = vmatprep.subr.bf16.mxu0 0
    %108 = vmatpush1.bf16.msra.mxu0 0
    %109 = vmatprep.subr.bf16.mxu0 0
    %110 = vmatpush1.bf16.msra.mxu0 0
    %111 = vmatprep.subr.bf16.mxu0 0
    %112 = vmatpush1.bf16.msra.mxu0 0
    %113 = vmatprep.subr.bf16.mxu0 0
    %114 = vmatpush1.bf16.msra.mxu0 0
    %115 = vmatprep.subr.bf16.mxu0 0
    %116 = vmatpush1.bf16.msra.mxu0 0
    %117 = vmatprep.subr.bf16.mxu0 0
    %118 = vmatpush1.bf16.msra.mxu0 0
    %119 = vmatprep.subr.bf16.mxu0 0
    %120 = vmatpush1.bf16.msra.mxu0 0
    %121 = vmatprep.subr.bf16.mxu0 0
    %122 = vmatpush1.bf16.msra.mxu0 0
    %123 = vmatprep.subr.bf16.mxu0 0
    %124 = vmatpush1.bf16.msra.mxu0 0
    %125 = vmatprep.subr.bf16.mxu0 0
    %126 = vmatpush1.bf16.msra.mxu0 0
    %127 = vmatprep.subr.bf16.mxu0 0
    %128 = vmatpush1.bf16.msra.mxu0 0
    %129 = vmatprep.subr.bf16.mxu0 0
    %130 = vmatpush1.bf16.msra.mxu0 0
    %131 = vmatprep.mubr.bf16.mxu0 0
    %132 = vmatmul.mubr.bf16.gmra.mrb[0].mxu0 %v97
    %v133 = vpop.f32.mrb[0].mxu0
    %v134 = vadd.f32 %v81, %v133
    %v135 = vpop.f32.mrb[0].mxu0
    %v136 = vpop.f32.mrb[0].mxu0
    %v137 = vadd.f32 %v81, %v136
    %v138 = vpop.f32.mrb[0].mxu0
    %139 = vdwg.mxu0
    %v140 = vtanh.pop %v134
    %v141 = vtanh.pop %v137
    %vm142 = vcmask 523264
    %v143 = vsel %vm142, %v140, 0.0
    %144 = vadd.xlane.f32.xlu0 %v143
    %v145 = vpop.xlane.xlu0 %144
    %v146 = vsel %vm142, %v141, 0.0
    %147 = vadd.xlane.f32.xlu0 %v146
    %v148 = vpop.xlane.xlu0 %147
    %v149 = vrcp.pop 64.0
    %v150 = vmul.f32 %v145, %v149
    %v151 = vmul.f32 %v148, %v149
    %v152 = vmul.f32 %v140, %v140
    %v153 = vmul.f32 %v141, %v141
    %v154 = vsel %vm142, %v152, 0.0
    %155 = vadd.xlane.f32.xlu0 %v154
    %v156 = vpop.xlane.xlu0 %155
    %v157 = vsel %vm142, %v153, 0.0
    %158 = vadd.xlane.f32.xlu0 %v157
    %v159 = vpop.xlane.xlu0 %158
    %v160 = vmul.f32 %v156, %v149
    %v161 = vmul.f32 %v159, %v149
    %v162 = vmul.f32 %v150, %v150
    %v163 = vmul.f32 %v151, %v151
    %v164 = vsub.f32 %v160, %v162
    %v165 = vsub.f32 %v161, %v163
    %v166 = vmax.f32 %v164, 0.0
    %v167 = vmax.f32 %v165, 0.0
    %v168 = vadd.f32 %v166, 1e-05
    %v169 = vadd.f32 %v167, 1e-05
    %v170 = vrsqrt.pop %v168
    %v171 = vrsqrt.pop %v169
    %v172 = vld [vmem:[%s5] sm:$0x1]
    %v174 = vlaneseq
    %v175 = vshrl.u32 %v174, 7
    %v176 = vsub.s32 0, %v175
    %v177 = vrot.slane %v172, %v176
    %v179 = vmul.f32 %v170, %v177
    %v180 = vmul.f32 %v171, %v177
    %v181 = vsub.f32 %v140, %v150
    %v182 = vsub.f32 %v141, %v151
    %v183 = vmul.f32 %v181, %v179
    %v184 = vmul.f32 %v182, %v180
    %v185 = vld [vmem:[%s6] sm:$0x1]
    %v187 = vlaneseq
    %v188 = vshrl.u32 %v187, 7
    %v189 = vsub.s32 0, %v188
    %v190 = vrot.slane %v185, %v189
    %v192 = vadd.f32 %v183, %v190
    %v193 = vadd.f32 %v184, %v190
    %v194 = vpack.c.bf16 %v193, %v192
    %v195 = vld [vmem:[#allocation7] sm:$0xf]
    %v196 = vld [vmem:[#allocation7 + $0x4] sm:$0xf]
    %v197 = vld [vmem:[#allocation7 + $0x8] sm:$0xf]
    %v198 = vld [vmem:[#allocation7 + $0xc] sm:$0xf]
    %v199 = vld [vmem:[#allocation7 + $0x10] sm:$0xf]
    %v200 = vld [vmem:[#allocation7 + $0x14] sm:$0xf]
    %v201 = vld [vmem:[#allocation7 + $0x18] sm:$0xf]
    %v202 = vld [vmem:[#allocation7 + $0x1c] sm:$0xf]
    %v203 = vld [vmem:[%s4] sm:$0x1]
    %v205 = vlaneseq
    %v206 = vshrl.u32 %v205, 7
    %v207 = vsub.s32 0, %v206
    %v208 = vrot.slane %v203, %v207
    %v218 = vunpack.c.l.b16 %v195
    %v219 = vunpack.c.l.b16 %v196
    %v220 = vunpack.c.l.b16 %v197
    %v221 = vunpack.c.l.b16 %v198
    %v222 = vunpack.c.l.b16 %v199
    %v223 = vunpack.c.l.b16 %v200
    %v224 = vunpack.c.l.b16 %v201
    %v225 = vunpack.c.l.b16 %v202
    %v226 = vpack.c.b16 %v219, %v218
    %v227 = vpack.c.b16 %v221, %v220
    %v228 = vpack.c.b16 %v223, %v222
    %v229 = vpack.c.b16 %v225, %v224
    %v235 = vsel %vm142, %v194, 0
    %237 = vmatprep.subr.bf16.mxu0 0
    %238 = vmatpush1.bf16.msra.mxu0 %v226
    %239 = vmatprep.subr.bf16.mxu0 0
    %240 = vmatpush1.bf16.msra.mxu0 %v227
    %241 = vmatprep.subr.bf16.mxu0 0
    %242 = vmatpush1.bf16.msra.mxu0 %v228
    %243 = vmatprep.subr.bf16.mxu0 0
    %244 = vmatpush1.bf16.msra.mxu0 %v229
    %245 = vmatprep.subr.bf16.mxu0 0
    %246 = vmatpush1.bf16.msra.mxu0 0
    %247 = vmatprep.subr.bf16.mxu0 0
    %248 = vmatpush1.bf16.msra.mxu0 0
    %249 = vmatprep.subr.bf16.mxu0 0
    %250 = vmatpush1.bf16.msra.mxu0 0
    %251 = vmatprep.subr.bf16.mxu0 0
    %252 = vmatpush1.bf16.msra.mxu0 0
    %253 = vmatprep.subr.bf16.mxu0 0
    %254 = vmatpush1.bf16.msra.mxu0 0
    %255 = vmatprep.subr.bf16.mxu0 0
    %256 = vmatpush1.bf16.msra.mxu0 0
    %257 = vmatprep.subr.bf16.mxu0 0
    %258 = vmatpush1.bf16.msra.mxu0 0
    %259 = vmatprep.subr.bf16.mxu0 0
    %260 = vmatpush1.bf16.msra.mxu0 0
    %261 = vmatprep.subr.bf16.mxu0 0
    %262 = vmatpush1.bf16.msra.mxu0 0
    %263 = vmatprep.subr.bf16.mxu0 0
    %264 = vmatpush1.bf16.msra.mxu0 0
    %265 = vmatprep.subr.bf16.mxu0 0
    %266 = vmatpush1.bf16.msra.mxu0 0
    %267 = vmatprep.subr.bf16.mxu0 0
    %268 = vmatpush1.bf16.msra.mxu0 0
    %269 = vmatprep.mubr.bf16.mxu0 0
    %270 = vmatmul.mubr.bf16.gmra.mrb[0].mxu0 %v235
    %v271 = vpop.f32.mrb[0].mxu0
    %v272 = vadd.f32 %v208, %v271
    %v273 = vpop.f32.mrb[0].mxu0
    %v274 = vpop.f32.mrb[0].mxu0
    %v275 = vadd.f32 %v208, %v274
    %v276 = vpop.f32.mrb[0].mxu0
    %277 = vdwg.mxu0
    %278 = vst [vmem:[#allocation8] sm:$0xff] %v272
    %279 = vst [vmem:[#allocation8 + $0x8] sm:$0xff] %v275
    // Predicated region
    $region42: #{tpu_custom_call.1} parent=1 // pred_check
      _
    $region43: #{tpu_custom_call.1} parent=1 // pred_check_branch
      %281 = sbr.rel (0) target = $region45
    $region44: #{tpu_custom_call.1} parent=1 // pred_region
      %s283 = ssub.s32 256, 256
      %284 = vsyncadd [#allocation4], %s283
      %s285 = sshll.u32 [#allocation8], 4
      %s286 = int_to_ptr.vmem [resolvable:$true] %s285
      %291 = dma.vmem_to_hbm [thread:$0]  %s286, 256, %s7, [#allocation4], 128, 128, 8
    $region45: #{tpu_custom_call.1} parent=1 // pred_fallthru
      _
    // Predicated region
    $region46: #{tpu_custom_call.1} parent=1 // pred_check
      _
    $region47: #{tpu_custom_call.1} parent=1 // pred_check_branch
      %293 = sbr.rel (0) target = $region49
    $region48: #{tpu_custom_call.1} parent=1 // pred_region
      %294 = dma.done [#allocation4], 256
    $region49: #{tpu_custom_call.1} parent=1 // pred_fallthru
      _
    %295 = vsyncpa [#allocation3], 1
    %296 = vsyncpa [#allocation6], 1
    %297 = vsyncpa [#allocation4], 1

</llo_original>
